<compile_context>
chip_gen: v6e
topology: v6e:2x2x1
jax: 0.10.0
libtpu: 0.0.40
codegen_flags: <defaults>
</compile_context>

<pallas_src>
import math
import jax
import jax.numpy as jnp
from jax.experimental import pallas as pl
from jax.experimental.pallas import tpu as pltpu


def _round_up(x, m):
    return -(-x // m) * m


def _tile_bytes(shape, itemsize):
    """Rough VMEM footprint of one tile after (8,128) padding of the two minor dims."""
    if len(shape) == 1:
        return _round_up(shape[0], 128) * itemsize
    lead = 1
    for d in shape[:-2]:
        lead *= d
    return lead * _round_up(shape[-2], 8) * _round_up(shape[-1], 128) * itemsize


def _pick_batch_tile(B, Ho, Wo, C, c_item, o_item, usable_vmem):
    """Choose how many images share a grid step.

    * Ho*Wo >= 256: one image per step (M already MXU-sized, no output transpose needed).
    * Small feature maps: grow Bt (divisor of B) until M = Bt*Ho*Wo reaches ~256, but never
      drop below 2 grid steps (v7x megacore) and never blow the VMEM budget.
    """
    HW = Ho * Wo
    if HW >= 256:
        return 1
    fixed = _tile_bytes((9, C, C), c_item) + _tile_bytes((C, 1), 4) + (2 << 20)
    best = 1
    for bt in range(1, B + 1):
        if B % bt:
            continue
        if B >= 2 and B // bt < 2:
            break
        need = (fixed
                + 2 * _tile_bytes((bt, 4, Ho + 1, Wo + 1, C), c_item)
                + 2 * _tile_bytes((C, bt * HW), o_item)
                + _tile_bytes((C, bt * HW), 4))
        if need > usable_vmem:
            break
        best = bt
        if bt * HW >= 256:
            break
    return best


def _downsample_kernel(x_ref, wt_ref, b_ref, o_ref, acc_ref):
    """One batch tile per grid step.

    x_ref:   (Bt, 4, Ho+1, Wo+1, C)  zero-padded, phase-split (space-to-depth) NHWC input
    wt_ref:  (9, C, C)               wt[t, co, ci] = w[co, ci, kh, kw], t = kh*3 + kw
    b_ref:   (C, 1)                  f32 bias column
    o_ref:   (C, Bt*Ho*Wo)           channel-major, lane-dense output block
    acc_ref: (C, Bt*Ho*Wo)           f32 accumulator scratch
    """
    Ho, Wo, C = x_ref.shape[2] - 1, x_ref.shape[3] - 1, x_ref.shape[4]
    M = x_ref.shape[0] * Ho * Wo

    # 9 accumulating K=C dots; every tap is a *contiguous* (unstrided) slice of one
    # stride-2 phase — no im2col scratch, no strided gathers.
    for kh in range(3):
        oh, ph = divmod(kh, 2)
        for kw in range(3):
            ow, pw = divmod(kw, 2)
            t = kh * 3 + kw
            phase = 2 * ph + pw
            tap = x_ref[:, phase:phase + 1, oh:oh + Ho, ow:ow + Wo, :]   # (Bt,1,Ho,Wo,C)
            part = jax.lax.dot_general(
                wt_ref[t], tap.reshape(M, C),
                dimension_numbers=(((1,), (1,)), ((), ())),
                preferred_element_type=jnp.float32,
            )                                                             # (C, M) f32
            if t == 0:
                acc_ref[...] = part
            else:
                acc_ref[...] += part

    o_ref[...] = (acc_ref[...] + b_ref[...]).astype(o_ref.dtype)


def downsample(x_nchw, weight_oihw, bias, time_embedding=None, *, compute_dtype=None):
    """Forward pass of DownSample. `time_embedding` is accepted but unused (as in PyTorch).

    compute_dtype=jnp.bfloat16 runs the MXU at full rate (accumulation stays f32).
    """
    B, C, H, W = x_nchw.shape
    Ho = (H - 1) // 2 + 1
    Wo = (W - 1) // 2 + 1
    HW = Ho * Wo
    out_dtype = x_nchw.dtype
    cdtype = jnp.dtype(compute_dtype) if compute_dtype is not None else jnp.dtype(out_dtype)

    # Pad in NCHW, then ONE fused transpose: NCHW -> 4 stride-2 phases of padded NHWC
    # (so every tap read in the kernel is contiguous), cast fused into the same copy.
    pad_b = 2 * Ho + 1 - H
    pad_r = 2 * Wo + 1 - W
    x_pad = jnp.pad(x_nchw, ((0, 0), (0, 0), (1, pad_b), (1, pad_r)))
    x_s2d = (
        x_pad.reshape(B, C, Ho + 1, 2, Wo + 1, 2)
        .transpose(0, 3, 5, 2, 4, 1)                  # (B, 2, 2, Ho+1, Wo+1, C)
        .reshape(B, 4, Ho + 1, Wo + 1, C)
        .astype(cdtype)
    )

    # Per-tap weight matrices: wt[t, co, ci] = w[co, ci, kh, kw], t = kh*3 + kw.
    wt = jnp.transpose(weight_oihw, (2, 3, 0, 1)).reshape(9, C, C).astype(cdtype)
    b_col = bias.reshape(C, 1).astype(jnp.float32)

    # Generation-aware VMEM budget (v7x: 64 MiB physical -> ~51 MiB usable; v5e/v6e: ~102 MiB).
    try:
        cap = int(pltpu.get_tpu_info().vmem_capacity_bytes)
    except Exception:
        cap = 64 << 20
    usable = max(cap - max(12 << 20, cap // 5), 16 << 20)

    c_item = jnp.dtype(cdtype).itemsize
    o_item = jnp.dtype(out_dtype).itemsize
    Bt = _pick_batch_tile(B, Ho, Wo, C, c_item, o_item, usable)
    nG = B // Bt
    Mt = Bt * HW

    in_tile = _tile_bytes((Bt, 4, Ho + 1, Wo + 1, C), c_item)
    out_tile = _tile_bytes((C, Mt), o_item)
    acc_tile = _tile_bytes((C, Mt), 4)
    w_tile = _tile_bytes((9, C, C), c_item) + _tile_bytes((C, 1), 4)
    vmem_need = 2 * in_tile + 2 * out_tile + acc_tile + w_tile + (2 << 20)
    vmem_limit = int(max(min(vmem_need, usable), 16 << 20))

    # Weights / bias never change across grid steps -> single-buffered residents.
    def _resident(shape):
        idx = lambda g, _n=len(shape): (0,) * _n
        try:
            return pl.BlockSpec(shape, idx, pipeline_mode=pl.Buffered(1))
        except (TypeError, AttributeError):
            return pl.BlockSpec(shape, idx)

    out_flat = pl.pallas_call(
        _downsample_kernel,
        out_shape=jax.ShapeDtypeStruct((nG, C, Mt), out_dtype),
        grid_spec=pltpu.PrefetchScalarGridSpec(
            num_scalar_prefetch=0,
            grid=(nG,),
            in_specs=[
                pl.BlockSpec((Bt, 4, Ho + 1, Wo + 1, C), lambda g: (g, 0, 0, 0, 0)),
                _resident((9, C, C)),
                _resident((C, 1)),
            ],
            out_specs=pl.BlockSpec((None, C, Mt), lambda g: (g, 0, 0)),
            scratch_shapes=[pltpu.VMEM((C, Mt), jnp.float32)],
        ),
        compiler_params=pltpu.CompilerParams(
            dimension_semantics=("parallel",),
            vmem_limit_bytes=vmem_limit,
        ),
    )(x_s2d, wt, b_col)

    if Bt == 1:
        # Channel-major kernel output -> NCHW is a pure reshape (no extra HBM pass).
        return out_flat.reshape(B, C, Ho, Wo)
    # Small-feature-map path (Bt images folded into the lane dim): cheap un-fold on HBM.
    return (out_flat.reshape(nG, C, Bt, Ho, Wo)
            .transpose(0, 2, 1, 3, 4)
            .reshape(B, C, Ho, Wo))


if __name__ == "__main__":
    key = jax.random.PRNGKey(0)

    def make_params(k, C):
        # Deterministic xavier_uniform_ init for weight (out_ch, in_ch, 3, 3), zeros bias.
        fan = C * 3 * 3
        bound = math.sqrt(6.0 / (fan + fan))
        w = jax.random.uniform(k, (C, C, 3, 3), jnp.float32, -bound, bound)
        b = jnp.zeros((C,), jnp.float32)
        return w, b

    def ref_conv(x, w, b):
        return jax.lax.conv_general_dilated(
            x, w, window_strides=(2, 2), padding=((1, 1), (1, 1)),
            dimension_numbers=("NCHW", "OIHW", "NCHW"),
        ) + b[None, :, None, None]

    fwd = jax.jit(downsample, static_argnames=("compute_dtype",))
    k1, k2, k3, k4 = jax.random.split(key, 4)

    # 1) Module's nominal small shape, f32, tight tolerance.
    x = jax.random.normal(k1, (2, 4, 16, 16), jnp.float32)
    w, b = make_params(k2, 4)
    t_emb = jnp.zeros((2, 32), jnp.float32)  # unused by forward (as in the PyTorch module)
    out = jax.block_until_ready(fwd(x, w, b, t_emb))
    ref = ref_conv(x, w, b)
    assert out.shape == (2, 4, 8, 8), out.shape
    assert jnp.allclose(out, ref, atol=1e-5, rtol=1e-5), float(jnp.max(jnp.abs(out - ref)))

    # 2) Odd spatial dims + batch-tile > 1 path (Bt=2), f32.
    x2 = jax.random.normal(k3, (4, 8, 15, 15), jnp.float32)
    w2, b2 = make_params(k4, 8)
    out2 = jax.block_until_ready(fwd(x2, w2, b2, None))
    ref2 = ref_conv(x2, w2, b2)
    assert out2.shape == (4, 8, 8, 8), out2.shape
    assert jnp.allclose(out2, ref2, atol=1e-5, rtol=1e-5), float(jnp.max(jnp.abs(out2 - ref2)))

    # 3) bf16 MXU path with a real channel count, looser tolerance vs f32 reference.
    x3 = jax.random.normal(k1, (2, 128, 16, 16), jnp.float32)
    w3, b3 = make_params(k2, 128)
    out3 = jax.block_until_ready(fwd(x3, w3, b3, None, compute_dtype=jnp.bfloat16))
    ref3 = ref_conv(x3, w3, b3)
    assert out3.shape == (2, 128, 8, 8), out3.shape
    assert jnp.allclose(out3, ref3, atol=7e-2, rtol=7e-2), float(jnp.max(jnp.abs(out3 - ref3)))

    print("KERNEL_OK")
</pallas_src>

<mosaic_0001>
module attributes {stable_mosaic.version = 11 : i64} {
  func.func @_downsample_kernel(%arg0: i32, %arg1: memref<1x4x9x9x4xf32, #tpu.memory_space<vmem>>, %arg2: memref<9x4x4xf32, #tpu.memory_space<vmem>>, %arg3: memref<4x1xf32, #tpu.memory_space<vmem>>, %arg4: memref<1x4x64xf32, #tpu.memory_space<vmem>>, %arg5: memref<4x64xf32, #tpu.memory_space<vmem>>) attributes {dimension_semantics = [#tpu.dimension_semantics<parallel>], iteration_bounds = array<i64: 2>, scalar_prefetch = 0 : i64, scratch_operands = 1 : i64, tpu.core_type = #tpu.core_type<tc>, window_params = [{transform_indices = @transform_0, window_bounds = array<i64: 1, 4, 9, 9, 4>}, {pipeline_mode = #tpu.pipeline_mode<synchronous>, transform_indices = @transform_1, window_bounds = array<i64: 9, 4, 4>}, {pipeline_mode = #tpu.pipeline_mode<synchronous>, transform_indices = @transform_2, window_bounds = array<i64: 4, 1>}, {transform_indices = @transform_3, window_bounds = array<i64: 1, 4, 64>}]} {
    %c0 = arith.constant 0 : index
    %c0_0 = arith.constant 0 : index
    %c0_1 = arith.constant 0 : index
    %c0_2 = arith.constant 0 : index
    %c0_3 = arith.constant 0 : index
    %0 = vector.load %arg1[%c0, %c0_0, %c0_1, %c0_2, %c0_3] : memref<1x4x9x9x4xf32, #tpu.memory_space<vmem>>, vector<1x1x8x8x4xf32>
    %c0_4 = arith.constant 0 : index
    %c0_5 = arith.constant 0 : index
    %c0_6 = arith.constant 0 : index
    %1 = vector.load %arg2[%c0_4, %c0_5, %c0_6] : memref<9x4x4xf32, #tpu.memory_space<vmem>>, vector<1x4x4xf32>
    %2 = vector.shape_cast %1 : vector<1x4x4xf32> to vector<4x4xf32>
    %3 = vector.shape_cast %0 : vector<1x1x8x8x4xf32> to vector<64x4xf32>
    %cst = arith.constant dense<0.000000e+00> : vector<4x64xf32>
    %4 = tpu.matmul %2, %3, %cst {dimension_numbers = #tpu.dot_dimension_numbers<[1], [1], [0], [0], [0, 0, 1, 0], [], []>} : vector<4x4xf32>, vector<64x4xf32>, vector<4x64xf32> -> vector<4x64xf32>
    %c0_7 = arith.constant 0 : index
    %c0_8 = arith.constant 0 : index
    %5 = vector.load %arg5[%c0_7, %c0_8] : memref<4x64xf32, #tpu.memory_space<vmem>>, vector<4x64xf32>
    tpu.vector_store %arg5[%c0_7, %c0_8], %4 {strides = array<i32>} : memref<4x64xf32, #tpu.memory_space<vmem>>, vector<4x64xf32>,
    %c0_9 = arith.constant 0 : index
    %c1 = arith.constant 1 : index
    %c0_10 = arith.constant 0 : index
    %c0_11 = arith.constant 0 : index
    %c0_12 = arith.constant 0 : index
    %6 = vector.load %arg1[%c0_9, %c1, %c0_10, %c0_11, %c0_12] : memref<1x4x9x9x4xf32, #tpu.memory_space<vmem>>, vector<1x1x8x8x4xf32>
    %c1_13 = arith.constant 1 : index
    %c0_14 = arith.constant 0 : index
    %c0_15 = arith.constant 0 : index
    %7 = vector.load %arg2[%c1_13, %c0_14, %c0_15] : memref<9x4x4xf32, #tpu.memory_space<vmem>>, vector<1x4x4xf32>
    %8 = vector.shape_cast %7 : vector<1x4x4xf32> to vector<4x4xf32>
    %9 = vector.shape_cast %6 : vector<1x1x8x8x4xf32> to vector<64x4xf32>
    %cst_16 = arith.constant dense<0.000000e+00> : vector<4x64xf32>
    %10 = tpu.matmul %8, %9, %cst_16 {dimension_numbers = #tpu.dot_dimension_numbers<[1], [1], [0], [0], [0, 0, 1, 0], [], []>} : vector<4x4xf32>, vector<64x4xf32>, vector<4x64xf32> -> vector<4x64xf32>
    %c0_17 = arith.constant 0 : index
    %c0_18 = arith.constant 0 : index
    %11 = vector.load %arg5[%c0_17, %c0_18] : memref<4x64xf32, #tpu.memory_space<vmem>>, vector<4x64xf32>
    %12 = arith.addf %11, %10 : vector<4x64xf32>
    %c0_19 = arith.constant 0 : index
    %c0_20 = arith.constant 0 : index
    %13 = vector.load %arg5[%c0_19, %c0_20] : memref<4x64xf32, #tpu.memory_space<vmem>>, vector<4x64xf32>
    tpu.vector_store %arg5[%c0_19, %c0_20], %12 {strides = array<i32>} : memref<4x64xf32, #tpu.memory_space<vmem>>, vector<4x64xf32>,
    %c0_21 = arith.constant 0 : index
    %c0_22 = arith.constant 0 : index
    %c0_23 = arith.constant 0 : index
    %c1_24 = arith.constant 1 : index
    %c0_25 = arith.constant 0 : index
    %14 = vector.load %arg1[%c0_21, %c0_22, %c0_23, %c1_24, %c0_25] : memref<1x4x9x9x4xf32, #tpu.memory_space<vmem>>, vector<1x1x8x8x4xf32>
    %c2 = arith.constant 2 : index
    %c0_26 = arith.constant 0 : index
    %c0_27 = arith.constant 0 : index
    %15 = vector.load %arg2[%c2, %c0_26, %c0_27] : memref<9x4x4xf32, #tpu.memory_space<vmem>>, vector<1x4x4xf32>
    %16 = vector.shape_cast %15 : vector<1x4x4xf32> to vector<4x4xf32>
    %17 = vector.shape_cast %14 : vector<1x1x8x8x4xf32> to vector<64x4xf32>
    %cst_28 = arith.constant dense<0.000000e+00> : vector<4x64xf32>
    %18 = tpu.matmul %16, %17, %cst_28 {dimension_numbers = #tpu.dot_dimension_numbers<[1], [1], [0], [0], [0, 0, 1, 0], [], []>} : vector<4x4xf32>, vector<64x4xf32>, vector<4x64xf32> -> vector<4x64xf32>
    %c0_29 = arith.constant 0 : index
    %c0_30 = arith.constant 0 : index
    %19 = vector.load %arg5[%c0_29, %c0_30] : memref<4x64xf32, #tpu.memory_space<vmem>>, vector<4x64xf32>
    %20 = arith.addf %19, %18 : vector<4x64xf32>
    %c0_31 = arith.constant 0 : index
    %c0_32 = arith.constant 0 : index
    %21 = vector.load %arg5[%c0_31, %c0_32] : memref<4x64xf32, #tpu.memory_space<vmem>>, vector<4x64xf32>
    tpu.vector_store %arg5[%c0_31, %c0_32], %20 {strides = array<i32>} : memref<4x64xf32, #tpu.memory_space<vmem>>, vector<4x64xf32>,
    %c0_33 = arith.constant 0 : index
    %c2_34 = arith.constant 2 : index
    %c0_35 = arith.constant 0 : index
    %c0_36 = arith.constant 0 : index
    %c0_37 = arith.constant 0 : index
    %22 = vector.load %arg1[%c0_33, %c2_34, %c0_35, %c0_36, %c0_37] : memref<1x4x9x9x4xf32, #tpu.memory_space<vmem>>, vector<1x1x8x8x4xf32>
    %c3 = arith.constant 3 : index
    %c0_38 = arith.constant 0 : index
    %c0_39 = arith.constant 0 : index
    %23 = vector.load %arg2[%c3, %c0_38, %c0_39] : memref<9x4x4xf32, #tpu.memory_space<vmem>>, vector<1x4x4xf32>
    %24 = vector.shape_cast %23 : vector<1x4x4xf32> to vector<4x4xf32>
    %25 = vector.shape_cast %22 : vector<1x1x8x8x4xf32> to vector<64x4xf32>
    %cst_40 = arith.constant dense<0.000000e+00> : vector<4x64xf32>
    %26 = tpu.matmul %24, %25, %cst_40 {dimension_numbers = #tpu.dot_dimension_numbers<[1], [1], [0], [0], [0, 0, 1, 0], [], []>} : vector<4x4xf32>, vector<64x4xf32>, vector<4x64xf32> -> vector<4x64xf32>
    %c0_41 = arith.constant 0 : index
    %c0_42 = arith.constant 0 : index
    %27 = vector.load %arg5[%c0_41, %c0_42] : memref<4x64xf32, #tpu.memory_space<vmem>>, vector<4x64xf32>
    %28 = arith.addf %27, %26 : vector<4x64xf32>
    %c0_43 = arith.constant 0 : index
    %c0_44 = arith.constant 0 : index
    %29 = vector.load %arg5[%c0_43, %c0_44] : memref<4x64xf32, #tpu.memory_space<vmem>>, vector<4x64xf32>
    tpu.vector_store %arg5[%c0_43, %c0_44], %28 {strides = array<i32>} : memref<4x64xf32, #tpu.memory_space<vmem>>, vector<4x64xf32>,
    %c0_45 = arith.constant 0 : index
    %c3_46 = arith.constant 3 : index
    %c0_47 = arith.constant 0 : index
    %c0_48 = arith.constant 0 : index
    %c0_49 = arith.constant 0 : index
    %30 = vector.load %arg1[%c0_45, %c3_46, %c0_47, %c0_48, %c0_49] : memref<1x4x9x9x4xf32, #tpu.memory_space<vmem>>, vector<1x1x8x8x4xf32>
    %c4 = arith.constant 4 : index
    %c0_50 = arith.constant 0 : index
    %c0_51 = arith.constant 0 : index
    %31 = vector.load %arg2[%c4, %c0_50, %c0_51] : memref<9x4x4xf32, #tpu.memory_space<vmem>>, vector<1x4x4xf32>
    %32 = vector.shape_cast %31 : vector<1x4x4xf32> to vector<4x4xf32>
    %33 = vector.shape_cast %30 : vector<1x1x8x8x4xf32> to vector<64x4xf32>
    %cst_52 = arith.constant dense<0.000000e+00> : vector<4x64xf32>
    %34 = tpu.matmul %32, %33, %cst_52 {dimension_numbers = #tpu.dot_dimension_numbers<[1], [1], [0], [0], [0, 0, 1, 0], [], []>} : vector<4x4xf32>, vector<64x4xf32>, vector<4x64xf32> -> vector<4x64xf32>
    %c0_53 = arith.constant 0 : index
    %c0_54 = arith.constant 0 : index
    %35 = vector.load %arg5[%c0_53, %c0_54] : memref<4x64xf32, #tpu.memory_space<vmem>>, vector<4x64xf32>
    %36 = arith.addf %35, %34 : vector<4x64xf32>
    %c0_55 = arith.constant 0 : index
    %c0_56 = arith.constant 0 : index
    %37 = vector.load %arg5[%c0_55, %c0_56] : memref<4x64xf32, #tpu.memory_space<vmem>>, vector<4x64xf32>
    tpu.vector_store %arg5[%c0_55, %c0_56], %36 {strides = array<i32>} : memref<4x64xf32, #tpu.memory_space<vmem>>, vector<4x64xf32>,
    %c0_57 = arith.constant 0 : index
    %c2_58 = arith.constant 2 : index
    %c0_59 = arith.constant 0 : index
    %c1_60 = arith.constant 1 : index
    %c0_61 = arith.constant 0 : index
    %38 = vector.load %arg1[%c0_57, %c2_58, %c0_59, %c1_60, %c0_61] : memref<1x4x9x9x4xf32, #tpu.memory_space<vmem>>, vector<1x1x8x8x4xf32>
    %c5 = arith.constant 5 : index
    %c0_62 = arith.constant 0 : index
    %c0_63 = arith.constant 0 : index
    %39 = vector.load %arg2[%c5, %c0_62, %c0_63] : memref<9x4x4xf32, #tpu.memory_space<vmem>>, vector<1x4x4xf32>
    %40 = vector.shape_cast %39 : vector<1x4x4xf32> to vector<4x4xf32>
    %41 = vector.shape_cast %38 : vector<1x1x8x8x4xf32> to vector<64x4xf32>
    %cst_64 = arith.constant dense<0.000000e+00> : vector<4x64xf32>
    %42 = tpu.matmul %40, %41, %cst_64 {dimension_numbers = #tpu.dot_dimension_numbers<[1], [1], [0], [0], [0, 0, 1, 0], [], []>} : vector<4x4xf32>, vector<64x4xf32>, vector<4x64xf32> -> vector<4x64xf32>
    %c0_65 = arith.constant 0 : index
    %c0_66 = arith.constant 0 : index
    %43 = vector.load %arg5[%c0_65, %c0_66] : memref<4x64xf32, #tpu.memory_space<vmem>>, vector<4x64xf32>
    %44 = arith.addf %43, %42 : vector<4x64xf32>
    %c0_67 = arith.constant 0 : index
    %c0_68 = arith.constant 0 : index
    %45 = vector.load %arg5[%c0_67, %c0_68] : memref<4x64xf32, #tpu.memory_space<vmem>>, vector<4x64xf32>
    tpu.vector_store %arg5[%c0_67, %c0_68], %44 {strides = array<i32>} : memref<4x64xf32, #tpu.memory_space<vmem>>, vector<4x64xf32>,
    %c0_69 = arith.constant 0 : index
    %c0_70 = arith.constant 0 : index
    %c1_71 = arith.constant 1 : index
    %c0_72 = arith.constant 0 : index
    %c0_73 = arith.constant 0 : index
    %46 = vector.load %arg1[%c0_69, %c0_70, %c1_71, %c0_72, %c0_73] : memref<1x4x9x9x4xf32, #tpu.memory_space<vmem>>, vector<1x1x8x8x4xf32>
    %c6 = arith.constant 6 : index
    %c0_74 = arith.constant 0 : index
    %c0_75 = arith.constant 0 : index
    %47 = vector.load %arg2[%c6, %c0_74, %c0_75] : memref<9x4x4xf32, #tpu.memory_space<vmem>>, vector<1x4x4xf32>
    %48 = vector.shape_cast %47 : vector<1x4x4xf32> to vector<4x4xf32>
    %49 = vector.shape_cast %46 : vector<1x1x8x8x4xf32> to vector<64x4xf32>
    %cst_76 = arith.constant dense<0.000000e+00> : vector<4x64xf32>
    %50 = tpu.matmul %48, %49, %cst_76 {dimension_numbers = #tpu.dot_dimension_numbers<[1], [1], [0], [0], [0, 0, 1, 0], [], []>} : vector<4x4xf32>, vector<64x4xf32>, vector<4x64xf32> -> vector<4x64xf32>
    %c0_77 = arith.constant 0 : index
    %c0_78 = arith.constant 0 : index
    %51 = vector.load %arg5[%c0_77, %c0_78] : memref<4x64xf32, #tpu.memory_space<vmem>>, vector<4x64xf32>
    %52 = arith.addf %51, %50 : vector<4x64xf32>
    %c0_79 = arith.constant 0 : index
    %c0_80 = arith.constant 0 : index
    %53 = vector.load %arg5[%c0_79, %c0_80] : memref<4x64xf32, #tpu.memory_space<vmem>>, vector<4x64xf32>
    tpu.vector_store %arg5[%c0_79, %c0_80], %52 {strides = array<i32>} : memref<4x64xf32, #tpu.memory_space<vmem>>, vector<4x64xf32>,
    %c0_81 = arith.constant 0 : index
    %c1_82 = arith.constant 1 : index
    %c1_83 = arith.constant 1 : index
    %c0_84 = arith.constant 0 : index
    %c0_85 = arith.constant 0 : index
    %54 = vector.load %arg1[%c0_81, %c1_82, %c1_83, %c0_84, %c0_85] : memref<1x4x9x9x4xf32, #tpu.memory_space<vmem>>, vector<1x1x8x8x4xf32>
    %c7 = arith.constant 7 : index
    %c0_86 = arith.constant 0 : index
    %c0_87 = arith.constant 0 : index
    %55 = vector.load %arg2[%c7, %c0_86, %c0_87] : memref<9x4x4xf32, #tpu.memory_space<vmem>>, vector<1x4x4xf32>
    %56 = vector.shape_cast %55 : vector<1x4x4xf32> to vector<4x4xf32>
    %57 = vector.shape_cast %54 : vector<1x1x8x8x4xf32> to vector<64x4xf32>
    %cst_88 = arith.constant dense<0.000000e+00> : vector<4x64xf32>
    %58 = tpu.matmul %56, %57, %cst_88 {dimension_numbers = #tpu.dot_dimension_numbers<[1], [1], [0], [0], [0, 0, 1, 0], [], []>} : vector<4x4xf32>, vector<64x4xf32>, vector<4x64xf32> -> vector<4x64xf32>
    %c0_89 = arith.constant 0 : index
    %c0_90 = arith.constant 0 : index
    %59 = vector.load %arg5[%c0_89, %c0_90] : memref<4x64xf32, #tpu.memory_space<vmem>>, vector<4x64xf32>
    %60 = arith.addf %59, %58 : vector<4x64xf32>
    %c0_91 = arith.constant 0 : index
    %c0_92 = arith.constant 0 : index
    %61 = vector.load %arg5[%c0_91, %c0_92] : memref<4x64xf32, #tpu.memory_space<vmem>>, vector<4x64xf32>
    tpu.vector_store %arg5[%c0_91, %c0_92], %60 {strides = array<i32>} : memref<4x64xf32, #tpu.memory_space<vmem>>, vector<4x64xf32>,
    %c0_93 = arith.constant 0 : index
    %c0_94 = arith.constant 0 : index
    %c1_95 = arith.constant 1 : index
    %c1_96 = arith.constant 1 : index
    %c0_97 = arith.constant 0 : index
    %62 = vector.load %arg1[%c0_93, %c0_94, %c1_95, %c1_96, %c0_97] : memref<1x4x9x9x4xf32, #tpu.memory_space<vmem>>, vector<1x1x8x8x4xf32>
    %c8 = arith.constant 8 : index
    %c0_98 = arith.constant 0 : index
    %c0_99 = arith.constant 0 : index
    %63 = vector.load %arg2[%c8, %c0_98, %c0_99] : memref<9x4x4xf32, #tpu.memory_space<vmem>>, vector<1x4x4xf32>
    %64 = vector.shape_cast %63 : vector<1x4x4xf32> to vector<4x4xf32>
    %65 = vector.shape_cast %62 : vector<1x1x8x8x4xf32> to vector<64x4xf32>
    %cst_100 = arith.constant dense<0.000000e+00> : vector<4x64xf32>
    %66 = tpu.matmul %64, %65, %cst_100 {dimension_numbers = #tpu.dot_dimension_numbers<[1], [1], [0], [0], [0, 0, 1, 0], [], []>} : vector<4x4xf32>, vector<64x4xf32>, vector<4x64xf32> -> vector<4x64xf32>
    %c0_101 = arith.constant 0 : index
    %c0_102 = arith.constant 0 : index
    %67 = vector.load %arg5[%c0_101, %c0_102] : memref<4x64xf32, #tpu.memory_space<vmem>>, vector<4x64xf32>
    %68 = arith.addf %67, %66 : vector<4x64xf32>
    %c0_103 = arith.constant 0 : index
    %c0_104 = arith.constant 0 : index
    %69 = vector.load %arg5[%c0_103, %c0_104] : memref<4x64xf32, #tpu.memory_space<vmem>>, vector<4x64xf32>
    tpu.vector_store %arg5[%c0_103, %c0_104], %68 {strides = array<i32>} : memref<4x64xf32, #tpu.memory_space<vmem>>, vector<4x64xf32>,
    %c0_105 = arith.constant 0 : index
    %c0_106 = arith.constant 0 : index
    %70 = vector.load %arg5[%c0_105, %c0_106] : memref<4x64xf32, #tpu.memory_space<vmem>>, vector<4x64xf32>
    %c0_107 = arith.constant 0 : index
    %c0_108 = arith.constant 0 : index
    %71 = vector.load %arg3[%c0_107, %c0_108] : memref<4x1xf32, #tpu.memory_space<vmem>>, vector<4x1xf32>
    %72 = vector.broadcast %71 : vector<4x1xf32> to vector<4x64xf32>
    %73 = arith.addf %70, %72 : vector<4x64xf32>
    %c0_109 = arith.constant 0 : index
    %c0_110 = arith.constant 0 : index
    %c0_111 = arith.constant 0 : index
    %74 = vector.load %arg4[%c0_109, %c0_110, %c0_111] : memref<1x4x64xf32, #tpu.memory_space<vmem>>, vector<1x4x64xf32>
    %75 = vector.shape_cast %74 : vector<1x4x64xf32> to vector<4x64xf32>
    %76 = vector.shape_cast %73 : vector<4x64xf32> to vector<1x4x64xf32>
    tpu.vector_store %arg4[%c0_109, %c0_110, %c0_111], %76 {strides = array<i32>} : memref<1x4x64xf32, #tpu.memory_space<vmem>>, vector<1x4x64xf32>,
    return
  }
  func.func @transform_0(%arg0: i32) -> (i32, i32, i32, i32, i32) {
    %c0_i32 = arith.constant 0 : i32
    %c0_i32_0 = arith.constant 0 : i32
    %c0_i32_1 = arith.constant 0 : i32
    %c0_i32_2 = arith.constant 0 : i32
    %c0_i32_3 = arith.constant 0 : i32
    return %arg0, %c0_i32, %c0_i32_0, %c0_i32_1, %c0_i32_2 : i32, i32, i32, i32, i32
  }
  func.func @transform_1(%arg0: i32) -> (i32, i32, i32) {
    %c0_i32 = arith.constant 0 : i32
    %c0_i32_0 = arith.constant 0 : i32
    %c0_i32_1 = arith.constant 0 : i32
    %c0_i32_2 = arith.constant 0 : i32
    return %c0_i32, %c0_i32_0, %c0_i32_1 : i32, i32, i32
  }
  func.func @transform_2(%arg0: i32) -> (i32, i32) {
    %c0_i32 = arith.constant 0 : i32
    %c0_i32_0 = arith.constant 0 : i32
    %c0_i32_1 = arith.constant 0 : i32
    return %c0_i32, %c0_i32_0 : i32, i32
  }
  func.func @transform_3(%arg0: i32) -> (i32, i32, i32) {
    %c0_i32 = arith.constant 0 : i32
    %c0_i32_0 = arith.constant 0 : i32
    %c0_i32_1 = arith.constant 0 : i32
    return %arg0, %c0_i32, %c0_i32_0 : i32, i32, i32
  }
}

</mosaic_0001>

<llo_original>
// kernel: downsample.1
$region0: #{downsample.1}
  #allocation0 [shape = 'u32[]', space=smem, size = 0x4, offset = 0x4, fixed_abs, tag = 'smem constant byte address 0x4 - core index']
  #allocation1 [shape = 'u32[144,128]{1,0:T(1,128)}', space=vmem, size = 0x12000, scoped, tag = 'internal scratch']
  #allocation2 [shape = 'f32[4,64]{1,0:T(4,128)}', space=vmem, size = 0x800, scoped, tag = 'scratch operand']
  %s0 = inlined_call_operand.vmem [shape: f32[2,4,9,9,4], index: 0, kind: input, shape index: {}]
  %s1 = inlined_call_operand.vmem [shape: f32[9,4,4], index: 1, kind: input, shape index: {}]
  %s2 = inlined_call_operand.vmem [shape: f32[4,1], index: 2, kind: input, shape index: {}]
  %s3 = inlined_call_operand.vmem [shape: f32[2,4,64], index: 3, kind: output, shape index: {}]
  %s4 = sld [smem:[#allocation0]]
  $region45: #{downsample.1} parent=0
    _
  %s6 = ssub.s32 1, %s4
  %s7 = scalar_select 0, %s6, %s4
  loop: start=0, step=1, limit=4
  $region2: #{downsample.1} parent=0 // loop_pre_header
    _
  $region3: #{downsample.1} parent=0 // loop_header
    %s9 = sphi 0, %s13
    %p10 = scmp.ge.s32.totalorder %s9, 4
    %s19 = sphi 0, %s21
    %s22 = sphi 0, %s19
    %s23 = sphi 0, %s22
    %s39 = sphi 0, %s23
    %s43 = sphi 0, %s43
    %s45 = sphi 0, %s43
    %s46 = sphi 0, %s45
    %s60 = sphi 0, %s46
    %s64 = sphi 0, %s64
    %s66 = sphi 0, %s64
    %s67 = sphi 0, %s66
    %s81 = sphi 0, %s67
    %s87 = sphi 0, %s89
    %s90 = sphi 0, %s87
    %s91 = sphi 0, %s90
    %s107 = sphi 0, %s91
  $region4: #{downsample.1} parent=0 // loop_header_branch
    %12 = sbr.rel (%p10) target = $region8
  $region5: #{downsample.1} parent=0 // loop_body
    %s14 = ssub.s32 %s9, 1
    %s15 = ssub.s32 %s9, 2
    %s16 = sadd.s32 %s9, 1
    %s17 = ssub.s32 %s9, %s16
    %p18 = scmp.eq.s32.totalorder %s17, 0
    %s20 = sadd.s32 %s19, 1
    %s21 = scalar_select %p18, %s19, %s20
    %p24 = pneg %p18
    %p25 = scmp.eq.s32.totalorder %s9, 1
    %p26 = por %p24, %p25
    %p27 = scmp.ne.s32.totalorder %s19, %s22
    %p28 = scmp.eq.s32.totalorder %s9, 0
    %p29 = por %p27, %p28
    %p30 = scmp.ne.s32.totalorder %s19, %s22
    %p31 = scmp.eq.s32.totalorder %s14, 1
    %p32 = por %p30, %p31
    %p33 = scmp.ne.s32.totalorder %s22, %s23
    %p34 = scmp.eq.s32.totalorder %s14, 0
    %p35 = por %p33, %p34
    %p36 = scmp.ne.s32.totalorder %s22, %s23
    %p37 = scmp.eq.s32.totalorder %s15, 1
    %p38 = por %p36, %p37
    %p40 = scmp.ne.s32.totalorder %s23, %s39
    %p41 = scmp.eq.s32.totalorder %s15, 0
    %p42 = por %p40, %p41
    %s44 = sadd.s32 %s43, 1
    %p47 = scmp.eq.s32.totalorder %s9, 1
    %p48 = scmp.ne.s32.totalorder %s43, %s45
    %p49 = scmp.eq.s32.totalorder %s9, 0
    %p50 = por %p48, %p49
    %p51 = scmp.ne.s32.totalorder %s43, %s45
    %p52 = scmp.eq.s32.totalorder %s14, 1
    %p53 = por %p51, %p52
    %p54 = scmp.ne.s32.totalorder %s45, %s46
    %p55 = scmp.eq.s32.totalorder %s14, 0
    %p56 = por %p54, %p55
    %p57 = scmp.ne.s32.totalorder %s45, %s46
    %p58 = scmp.eq.s32.totalorder %s15, 1
    %p59 = por %p57, %p58
    %p61 = scmp.ne.s32.totalorder %s46, %s60
    %p62 = scmp.eq.s32.totalorder %s15, 0
    %p63 = por %p61, %p62
    %s65 = sadd.s32 %s64, 1
    %p68 = scmp.eq.s32.totalorder %s9, 1
    %p69 = scmp.ne.s32.totalorder %s64, %s66
    %p70 = scmp.eq.s32.totalorder %s9, 0
    %p71 = por %p69, %p70
    %p72 = scmp.ne.s32.totalorder %s64, %s66
    %p73 = scmp.eq.s32.totalorder %s14, 1
    %p74 = por %p72, %p73
    %p75 = scmp.ne.s32.totalorder %s66, %s67
    %p76 = scmp.eq.s32.totalorder %s14, 0
    %p77 = por %p75, %p76
    %p78 = scmp.ne.s32.totalorder %s66, %s67
    %p79 = scmp.eq.s32.totalorder %s15, 1
    %p80 = por %p78, %p79
    %p82 = scmp.ne.s32.totalorder %s67, %s81
    %p83 = scmp.eq.s32.totalorder %s15, 0
    %p84 = por %p82, %p83
    %s85 = ssub.s32 %s9, %s16
    %p86 = scmp.eq.s32.totalorder %s85, 0
    %s88 = sadd.s32 %s87, 1
    %s89 = scalar_select %p86, %s87, %s88
    %p92 = pneg %p86
    %p93 = scmp.eq.s32.totalorder %s9, 1
    %p94 = por %p92, %p93
    %p95 = scmp.ne.s32.totalorder %s87, %s90
    %p96 = scmp.eq.s32.totalorder %s9, 0
    %p97 = por %p95, %p96
    %p98 = scmp.ne.s32.totalorder %s87, %s90
    %p99 = scmp.eq.s32.totalorder %s14, 1
    %p100 = por %p98, %p99
    %p101 = scmp.ne.s32.totalorder %s90, %s91
    %p102 = scmp.eq.s32.totalorder %s14, 0
    %p103 = por %p101, %p102
    %p104 = scmp.ne.s32.totalorder %s90, %s91
    %p105 = scmp.eq.s32.totalorder %s15, 1
    %p106 = por %p104, %p105
    %p108 = scmp.ne.s32.totalorder %s91, %s107
    %p109 = scmp.eq.s32.totalorder %s15, 0
    %p110 = por %p108, %p109
    %p111 = scmp.le.s32.totalorder 1, %s9
    %p112 = scmp.lt.s32.totalorder %s9, 3
    %p113 = pnand %p111, %p112
    %p114 = pneg %p113
    // Predicated region
    $region9: #{downsample.1} parent=5 // pred_check
      _
    $region10: #{downsample.1} parent=5 // pred_check_branch
      %116 = sbr.rel (%p113) target = $region12
    $region11: #{downsample.1} parent=5 // pred_region
      %s117 = ssub.s32 %s9, 1
      // Predicated region
      $region13: #{downsample.1} parent=11 // pred_check
        %p118 = pneg %p56
      $region14: #{downsample.1} parent=11 // pred_check_branch
        %120 = sbr.rel (%p118) target = $region16
      $region15: #{downsample.1} parent=11 // pred_region
        _
      $region16: #{downsample.1} parent=11 // pred_fallthru
        _
      // Predicated region
      $region17: #{downsample.1} parent=11 // pred_check
        %p121 = pneg %p77
      $region18: #{downsample.1} parent=11 // pred_check_branch
        %123 = sbr.rel (%p121) target = $region20
      $region19: #{downsample.1} parent=11 // pred_region
        _
      $region20: #{downsample.1} parent=11 // pred_fallthru
        _
    $region12: #{downsample.1} parent=5 // pred_fallthru
      _
    %p124 = scmp.lt.s32.totalorder %s9, 2
    // Predicated region
    $region21: #{downsample.1} parent=5 // pred_check
      %p125 = pneg %p124
    $region22: #{downsample.1} parent=5 // pred_check_branch
      %127 = sbr.rel (%p125) target = $region24
    $region23: #{downsample.1} parent=5 // pred_region
      // Predicated region
      $region25: #{downsample.1} parent=23 // pred_check
        %p128 = pneg %p29
      $region26: #{downsample.1} parent=23 // pred_check_branch
        %130 = sbr.rel (%p128) target = $region28
      $region27: #{downsample.1} parent=23 // pred_region
        %p131 = scmp.lt.s32.totalorder %s9, 1
        %s132 = scalar_select %p131, %s9, 1
        %s133 = smul.addr %s132, 72
        %s134 = smul.addr %s133, 8
        %s135 = scalar_lea.vmem %s0, %s134
      $region28: #{downsample.1} parent=23 // pred_fallthru
        _
    $region24: #{downsample.1} parent=5 // pred_fallthru
      _
    %p136 = scmp.le.s32.totalorder 1, %s9
    %p137 = scmp.lt.s32.totalorder %s9, 3
    %p138 = pnand %p136, %p137
    %p139 = pneg %p138
    // Predicated region
    $region29: #{downsample.1} parent=5 // pred_check
      _
    $region30: #{downsample.1} parent=5 // pred_check_branch
      %141 = sbr.rel (%p138) target = $region32
    $region31: #{downsample.1} parent=5 // pred_region
      %s142 = ssub.s32 %s9, 1
      %p143 = scmp.lt.s32.totalorder %s14, 1
      %s144 = scalar_select %p143, %s14, 1
      %s145 = smul.addr %s144, 72
      %s146 = smul.addr %s145, 8
      %s147 = scalar_lea.vmem %s0, %s146
      %p148 = pneg %p35
      %p149 = pneg %p32
      %p150 = pneg %p56
      %p151 = pneg %p53
      %p152 = pneg %p77
      %p153 = pneg %p74
      %p154 = pneg %p103
      %p155 = pneg %p100
      %p156 = scmp.lt.s32.totalorder %s14, 1
      %s157 = scalar_select %p156, %s14, 1
      %s158 = smul.addr %s157, 4
      %s159 = scalar_lea.vmem %s3, %s158
      %p160 = scmp.lt.s32.totalorder %s14, 1
      %s161 = scalar_select %p160, %s14, 1
      %s162 = smul.addr %s161, 72
      %s163 = smul.addr %s162, 8
      %s164 = scalar_lea.vmem %s0, %s163
      %p165 = scmp.lt.s32.totalorder %s14, 1
      %s166 = scalar_select %p165, %s14, 1
      %s167 = smul.addr %s166, 4
      %s168 = scalar_lea.vmem %s3, %s167
      %v169 = vld [vmem:[%s164] sm:$0xff]
      %v170 = vld [vmem:[%s164 + $0x10] sm:$0xff]
      %v171 = vld [vmem:[%s164 + $0x20] sm:$0xff]
      %v172 = vld [vmem:[%s164 + $0x30] sm:$0xff]
      %v173 = vld [vmem:[%s164 + $0x40] sm:$0xff]
      %v174 = vld [vmem:[%s164 + $0x50] sm:$0xff]
      %v175 = vld [vmem:[%s164 + $0x60] sm:$0xff]
      %v176 = vld [vmem:[%s164 + $0x70] sm:$0xff]
      %v177 = vld [vmem:[%s1] sm:$0xf]
      %vm178 = vcmask 31744
      %v180 = vsel %vm178, %v177, 0
      %v183 = vsel %vm178, %v169, 0
      %v186 = vsel %vm178, %v170, 0
      %v189 = vsel %vm178, %v171, 0
      %v192 = vsel %vm178, %v172, 0
      %v195 = vsel %vm178, %v173, 0
      %v198 = vsel %vm178, %v174, 0
      %v201 = vsel %vm178, %v175, 0
      %v204 = vsel %vm178, %v176, 0
      %206 = vmatprep.subr.mxu0 0.0
      %207 = vmatpush1.xpose.msra.mxu0 0.0
      %208 = vmatprep.subr.mxu0 0.0
      %209 = vmatpush1.xpose.msra.mxu0 0.0
      %210 = vmatprep.subr.mxu0 0.0
      %211 = vmatpush1.xpose.msra.mxu0 0.0
      %212 = vmatprep.subr.mxu0 0.0
      %213 = vmatpush1.xpose.msra.mxu0 0.0
      %214 = vmatprep.subr.mxu0 0.0
      %215 = vmatpush1.xpose.msra.mxu0 0.0
      %216 = vmatprep.subr.mxu0 0.0
      %217 = vmatpush1.xpose.msra.mxu0 0.0
      %218 = vmatprep.subr.mxu0 0.0
      %219 = vmatpush1.xpose.msra.mxu0 0.0
      %220 = vmatprep.subr.mxu0 0.0
      %221 = vmatpush1.xpose.msra.mxu0 0.0
      %222 = vmatprep.subr.mxu0 0.0
      %223 = vmatpush1.xpose.msra.mxu0 %v204
      %224 = vmatprep.subr.mxu0 0.0
      %225 = vmatpush1.xpose.msra.mxu0 %v201
      %226 = vmatprep.subr.mxu0 0.0
      %227 = vmatpush1.xpose.msra.mxu0 %v198
      %228 = vmatprep.subr.mxu0 0.0
      %229 = vmatpush1.xpose.msra.mxu0 %v195
      %230 = vmatprep.subr.mxu0 0.0
      %231 = vmatpush1.xpose.msra.mxu0 %v192
      %232 = vmatprep.subr.mxu0 0.0
      %233 = vmatpush1.xpose.msra.mxu0 %v189
      %234 = vmatprep.subr.mxu0 0.0
      %235 = vmatpush1.xpose.msra.mxu0 %v186
      %236 = vmatprep.subr.mxu0 0.0
      %237 = vmatpush1.xpose.msra.mxu0 %v183
      %238 = vmatprep.subr.mxu0 0.0
      %239 = vmatpush2.xpose.msra.mxu0 0.0
      %240 = vmatprep.subr.mxu0 0.0
      %241 = vmatpush2.xpose.msra.mxu0 0.0
      %242 = vmatprep.subr.mxu0 0.0
      %243 = vmatpush2.xpose.msra.mxu0 0.0
      %244 = vmatprep.subr.mxu0 0.0
      %245 = vmatpush2.xpose.msra.mxu0 0.0
      %246 = vmatprep.subr.mxu0 0.0
      %247 = vmatpush2.xpose.msra.mxu0 0.0
      %248 = vmatprep.subr.mxu0 0.0
      %249 = vmatpush2.xpose.msra.mxu0 0.0
      %250 = vmatprep.subr.mxu0 0.0
      %251 = vmatpush2.xpose.msra.mxu0 0.0
      %252 = vmatprep.subr.mxu0 0.0
      %253 = vmatpush2.xpose.msra.mxu0 0.0
      %254 = vmatprep.subr.mxu0 0.0
      %255 = vmatpush2.xpose.msra.mxu0 0.0
      %256 = vmatprep.subr.mxu0 0.0
      %257 = vmatpush2.xpose.msra.mxu0 0.0
      %258 = vmatprep.subr.mxu0 0.0
      %259 = vmatpush2.xpose.msra.mxu0 0.0
      %260 = vmatprep.subr.mxu0 0.0
      %261 = vmatpush2.xpose.msra.mxu0 0.0
      %262 = vmatprep.subr.mxu0 0.0
      %263 = vmatpush2.xpose.msra.mxu0 0.0
      %264 = vmatprep.subr.mxu0 0.0
      %265 = vmatpush2.xpose.msra.mxu0 0.0
      %266 = vmatprep.subr.mxu0 0.0
      %267 = vmatpush2.xpose.msra.mxu0 0.0
      %268 = vmatprep.subr.mxu0 0.0
      %269 = vmatpush2.xpose.msra.mxu0 0.0
      %270 = vmatprep.mubr.f32.mxu0 0.0
      %271 = vmatmul.mubr.f32.gmra.mxu0 %v180
      %v272 = vpop.f32.mrf.mxu0
      %v273 = vadd.f32 0.0, %v272
      %v274 = vpop.f32.mrf.mxu0
      %275 = vdwg.mxu0
      %vm276 = vcmask 519168
      %277 = vst.msk [vmem:[#allocation2] sm:$0xf] %vm276, %v273
      %s278 = scalar_lea.vmem %s164, 144
      %v279 = vld [vmem:[%s278] sm:$0xff]
      %v280 = vld [vmem:[%s278 + $0x10] sm:$0xff]
      %v281 = vld [vmem:[%s278 + $0x20] sm:$0xff]
      %v282 = vld [vmem:[%s278 + $0x30] sm:$0xff]
      %v283 = vld [vmem:[%s278 + $0x40] sm:$0xff]
      %v284 = vld [vmem:[%s278 + $0x50] sm:$0xff]
      %v285 = vld [vmem:[%s278 + $0x60] sm:$0xff]
      %v286 = vld [vmem:[%s278 + $0x70] sm:$0xff]
      %s287 = scalar_lea.vmem %s1, 4
      %v288 = vld [vmem:[%s287] sm:$0xf]
      %v290 = vsel %vm178, %v288, 0
      %v293 = vsel %vm178, %v279, 0
      %v296 = vsel %vm178, %v280, 0
      %v299 = vsel %vm178, %v281, 0
      %v302 = vsel %vm178, %v282, 0
      %v305 = vsel %vm178, %v283, 0
      %v308 = vsel %vm178, %v284, 0
      %v311 = vsel %vm178, %v285, 0
      %v314 = vsel %vm178, %v286, 0
      %316 = vmatprep.subr.mxu0 0.0
      %317 = vmatpush1.xpose.msra.mxu0 0.0
      %318 = vmatprep.subr.mxu0 0.0
      %319 = vmatpush1.xpose.msra.mxu0 0.0
      %320 = vmatprep.subr.mxu0 0.0
      %321 = vmatpush1.xpose.msra.mxu0 0.0
      %322 = vmatprep.subr.mxu0 0.0
      %323 = vmatpush1.xpose.msra.mxu0 0.0
      %324 = vmatprep.subr.mxu0 0.0
      %325 = vmatpush1.xpose.msra.mxu0 0.0
      %326 = vmatprep.subr.mxu0 0.0
      %327 = vmatpush1.xpose.msra.mxu0 0.0
      %328 = vmatprep.subr.mxu0 0.0
      %329 = vmatpush1.xpose.msra.mxu0 0.0
      %330 = vmatprep.subr.mxu0 0.0
      %331 = vmatpush1.xpose.msra.mxu0 0.0
      %332 = vmatprep.subr.mxu0 0.0
      %333 = vmatpush1.xpose.msra.mxu0 %v314
      %334 = vmatprep.subr.mxu0 0.0
      %335 = vmatpush1.xpose.msra.mxu0 %v311
      %336 = vmatprep.subr.mxu0 0.0
      %337 = vmatpush1.xpose.msra.mxu0 %v308
      %338 = vmatprep.subr.mxu0 0.0
      %339 = vmatpush1.xpose.msra.mxu0 %v305
      %340 = vmatprep.subr.mxu0 0.0
      %341 = vmatpush1.xpose.msra.mxu0 %v302
      %342 = vmatprep.subr.mxu0 0.0
      %343 = vmatpush1.xpose.msra.mxu0 %v299
      %344 = vmatprep.subr.mxu0 0.0
      %345 = vmatpush1.xpose.msra.mxu0 %v296
      %346 = vmatprep.subr.mxu0 0.0
      %347 = vmatpush1.xpose.msra.mxu0 %v293
      %348 = vmatprep.subr.mxu0 0.0
      %349 = vmatpush2.xpose.msra.mxu0 0.0
      %350 = vmatprep.subr.mxu0 0.0
      %351 = vmatpush2.xpose.msra.mxu0 0.0
      %352 = vmatprep.subr.mxu0 0.0
      %353 = vmatpush2.xpose.msra.mxu0 0.0
      %354 = vmatprep.subr.mxu0 0.0
      %355 = vmatpush2.xpose.msra.mxu0 0.0
      %356 = vmatprep.subr.mxu0 0.0
      %357 = vmatpush2.xpose.msra.mxu0 0.0
      %358 = vmatprep.subr.mxu0 0.0
      %359 = vmatpush2.xpose.msra.mxu0 0.0
      %360 = vmatprep.subr.mxu0 0.0
      %361 = vmatpush2.xpose.msra.mxu0 0.0
      %362 = vmatprep.subr.mxu0 0.0
      %363 = vmatpush2.xpose.msra.mxu0 0.0
      %364 = vmatprep.subr.mxu0 0.0
      %365 = vmatpush2.xpose.msra.mxu0 0.0
      %366 = vmatprep.subr.mxu0 0.0
      %367 = vmatpush2.xpose.msra.mxu0 0.0
      %368 = vmatprep.subr.mxu0 0.0
      %369 = vmatpush2.xpose.msra.mxu0 0.0
      %370 = vmatprep.subr.mxu0 0.0
      %371 = vmatpush2.xpose.msra.mxu0 0.0
      %372 = vmatprep.subr.mxu0 0.0
      %373 = vmatpush2.xpose.msra.mxu0 0.0
      %374 = vmatprep.subr.mxu0 0.0
      %375 = vmatpush2.xpose.msra.mxu0 0.0
      %376 = vmatprep.subr.mxu0 0.0
      %377 = vmatpush2.xpose.msra.mxu0 0.0
      %378 = vmatprep.subr.mxu0 0.0
      %379 = vmatpush2.xpose.msra.mxu0 0.0
      %380 = vmatprep.mubr.f32.mxu0 0.0
      %381 = vmatmul.mubr.f32.gmra.mxu0 %v290
      %v382 = vpop.f32.mrf.mxu0
      %v383 = vadd.f32 0.0, %v382
      %v384 = vpop.f32.mrf.mxu0
      %385 = vdwg.mxu0
      %v386 = vld [vmem:[#allocation2] sm:$0xf]
      %v387 = vadd.f32 %v386, %v383
      %388 = vst.msk [vmem:[#allocation2] sm:$0xf] %vm276, %v387
      %v389 = vld [vmem:[%s164 + $0x1] sm:$0xff]
      %v390 = vld [vmem:[%s164 + $0x11] sm:$0xff]
      %v391 = vld [vmem:[%s164 + $0x21] sm:$0xff]
      %v392 = vld [vmem:[%s164 + $0x31] sm:$0xff]
      %v393 = vld [vmem:[%s164 + $0x41] sm:$0xff]
      %v394 = vld [vmem:[%s164 + $0x51] sm:$0xff]
      %v395 = vld [vmem:[%s164 + $0x61] sm:$0xff]
      %v396 = vld [vmem:[%s164 + $0x71] sm:$0xff]
      %s397 = scalar_lea.vmem %s1, 8
      %v398 = vld [vmem:[%s397] sm:$0xf]
      %v400 = vsel %vm178, %v398, 0
      %v403 = vsel %vm178, %v389, 0
      %v406 = vsel %vm178, %v390, 0
      %v409 = vsel %vm178, %v391, 0
      %v412 = vsel %vm178, %v392, 0
      %v415 = vsel %vm178, %v393, 0
      %v418 = vsel %vm178, %v394, 0
      %v421 = vsel %vm178, %v395, 0
      %v424 = vsel %vm178, %v396, 0
      %426 = vmatprep.subr.mxu0 0.0
      %427 = vmatpush1.xpose.msra.mxu0 0.0
      %428 = vmatprep.subr.mxu0 0.0
      %429 = vmatpush1.xpose.msra.mxu0 0.0
      %430 = vmatprep.subr.mxu0 0.0
      %431 = vmatpush1.xpose.msra.mxu0 0.0
      %432 = vmatprep.subr.mxu0 0.0
      %433 = vmatpush1.xpose.msra.mxu0 0.0
      %434 = vmatprep.subr.mxu0 0.0
      %435 = vmatpush1.xpose.msra.mxu0 0.0
      %436 = vmatprep.subr.mxu0 0.0
      %437 = vmatpush1.xpose.msra.mxu0 0.0
      %438 = vmatprep.subr.mxu0 0.0
      %439 = vmatpush1.xpose.msra.mxu0 0.0
      %440 = vmatprep.subr.mxu0 0.0
      %441 = vmatpush1.xpose.msra.mxu0 0.0
      %442 = vmatprep.subr.mxu0 0.0
      %443 = vmatpush1.xpose.msra.mxu0 %v424
      %444 = vmatprep.subr.mxu0 0.0
      %445 = vmatpush1.xpose.msra.mxu0 %v421
      %446 = vmatprep.subr.mxu0 0.0
      %447 = vmatpush1.xpose.msra.mxu0 %v418
      %448 = vmatprep.subr.mxu0 0.0
      %449 = vmatpush1.xpose.msra.mxu0 %v415
      %450 = vmatprep.subr.mxu0 0.0
      %451 = vmatpush1.xpose.msra.mxu0 %v412
      %452 = vmatprep.subr.mxu0 0.0
      %453 = vmatpush1.xpose.msra.mxu0 %v409
      %454 = vmatprep.subr.mxu0 0.0
      %455 = vmatpush1.xpose.msra.mxu0 %v406
      %456 = vmatprep.subr.mxu0 0.0
      %457 = vmatpush1.xpose.msra.mxu0 %v403
      %458 = vmatprep.subr.mxu0 0.0
      %459 = vmatpush2.xpose.msra.mxu0 0.0
      %460 = vmatprep.subr.mxu0 0.0
      %461 = vmatpush2.xpose.msra.mxu0 0.0
      %462 = vmatprep.subr.mxu0 0.0
      %463 = vmatpush2.xpose.msra.mxu0 0.0
      %464 = vmatprep.subr.mxu0 0.0
      %465 = vmatpush2.xpose.msra.mxu0 0.0
      %466 = vmatprep.subr.mxu0 0.0
      %467 = vmatpush2.xpose.msra.mxu0 0.0
      %468 = vmatprep.subr.mxu0 0.0
      %469 = vmatpush2.xpose.msra.mxu0 0.0
      %470 = vmatprep.subr.mxu0 0.0
      %471 = vmatpush2.xpose.msra.mxu0 0.0
      %472 = vmatprep.subr.mxu0 0.0
      %473 = vmatpush2.xpose.msra.mxu0 0.0
      %474 = vmatprep.subr.mxu0 0.0
      %475 = vmatpush2.xpose.msra.mxu0 0.0
      %476 = vmatprep.subr.mxu0 0.0
      %477 = vmatpush2.xpose.msra.mxu0 0.0
      %478 = vmatprep.subr.mxu0 0.0
      %479 = vmatpush2.xpose.msra.mxu0 0.0
      %480 = vmatprep.subr.mxu0 0.0
      %481 = vmatpush2.xpose.msra.mxu0 0.0
      %482 = vmatprep.subr.mxu0 0.0
      %483 = vmatpush2.xpose.msra.mxu0 0.0
      %484 = vmatprep.subr.mxu0 0.0
      %485 = vmatpush2.xpose.msra.mxu0 0.0
      %486 = vmatprep.subr.mxu0 0.0
      %487 = vmatpush2.xpose.msra.mxu0 0.0
      %488 = vmatprep.subr.mxu0 0.0
      %489 = vmatpush2.xpose.msra.mxu0 0.0
      %490 = vmatprep.mubr.f32.mxu0 0.0
      %491 = vmatmul.mubr.f32.gmra.mxu0 %v400
      %v492 = vpop.f32.mrf.mxu0
      %v493 = vadd.f32 0.0, %v492
      %v494 = vpop.f32.mrf.mxu0
      %495 = vdwg.mxu0
      %v496 = vld [vmem:[#allocation2] sm:$0xf]
      %v497 = vadd.f32 %v496, %v493
      %498 = vst.msk [vmem:[#allocation2] sm:$0xf] %vm276, %v497
      %s499 = scalar_lea.vmem %s164, 288
      %v500 = vld [vmem:[%s499] sm:$0xff]
      %v501 = vld [vmem:[%s499 + $0x10] sm:$0xff]
      %v502 = vld [vmem:[%s499 + $0x20] sm:$0xff]
      %v503 = vld [vmem:[%s499 + $0x30] sm:$0xff]
      %v504 = vld [vmem:[%s499 + $0x40] sm:$0xff]
      %v505 = vld [vmem:[%s499 + $0x50] sm:$0xff]
      %v506 = vld [vmem:[%s499 + $0x60] sm:$0xff]
      %v507 = vld [vmem:[%s499 + $0x70] sm:$0xff]
      %s508 = scalar_lea.vmem %s1, 12
      %v509 = vld [vmem:[%s508] sm:$0xf]
      %v511 = vsel %vm178, %v509, 0
      %v514 = vsel %vm178, %v500, 0
      %v517 = vsel %vm178, %v501, 0
      %v520 = vsel %vm178, %v502, 0
      %v523 = vsel %vm178, %v503, 0
      %v526 = vsel %vm178, %v504, 0
      %v529 = vsel %vm178, %v505, 0
      %v532 = vsel %vm178, %v506, 0
      %v535 = vsel %vm178, %v507, 0
      %537 = vmatprep.subr.mxu0 0.0
      %538 = vmatpush1.xpose.msra.mxu0 0.0
      %539 = vmatprep.subr.mxu0 0.0
      %540 = vmatpush1.xpose.msra.mxu0 0.0
      %541 = vmatprep.subr.mxu0 0.0
      %542 = vmatpush1.xpose.msra.mxu0 0.0
      %543 = vmatprep.subr.mxu0 0.0
      %544 = vmatpush1.xpose.msra.mxu0 0.0
      %545 = vmatprep.subr.mxu0 0.0
      %546 = vmatpush1.xpose.msra.mxu0 0.0
      %547 = vmatprep.subr.mxu0 0.0
      %548 = vmatpush1.xpose.msra.mxu0 0.0
      %549 = vmatprep.subr.mxu0 0.0
      %550 = vmatpush1.xpose.msra.mxu0 0.0
      %551 = vmatprep.subr.mxu0 0.0
      %552 = vmatpush1.xpose.msra.mxu0 0.0
      %553 = vmatprep.subr.mxu0 0.0
      %554 = vmatpush1.xpose.msra.mxu0 %v535
      %555 = vmatprep.subr.mxu0 0.0
      %556 = vmatpush1.xpose.msra.mxu0 %v532
      %557 = vmatprep.subr.mxu0 0.0
      %558 = vmatpush1.xpose.msra.mxu0 %v529
      %559 = vmatprep.subr.mxu0 0.0
      %560 = vmatpush1.xpose.msra.mxu0 %v526
      %561 = vmatprep.subr.mxu0 0.0
      %562 = vmatpush1.xpose.msra.mxu0 %v523
      %563 = vmatprep.subr.mxu0 0.0
      %564 = vmatpush1.xpose.msra.mxu0 %v520
      %565 = vmatprep.subr.mxu0 0.0
      %566 = vmatpush1.xpose.msra.mxu0 %v517
      %567 = vmatprep.subr.mxu0 0.0
      %568 = vmatpush1.xpose.msra.mxu0 %v514
      %569 = vmatprep.subr.mxu0 0.0
      %570 = vmatpush2.xpose.msra.mxu0 0.0
      %571 = vmatprep.subr.mxu0 0.0
      %572 = vmatpush2.xpose.msra.mxu0 0.0
      %573 = vmatprep.subr.mxu0 0.0
      %574 = vmatpush2.xpose.msra.mxu0 0.0
      %575 = vmatprep.subr.mxu0 0.0
      %576 = vmatpush2.xpose.msra.mxu0 0.0
      %577 = vmatprep.subr.mxu0 0.0
      %578 = vmatpush2.xpose.msra.mxu0 0.0
      %579 = vmatprep.subr.mxu0 0.0
      %580 = vmatpush2.xpose.msra.mxu0 0.0
      %581 = vmatprep.subr.mxu0 0.0
      %582 = vmatpush2.xpose.msra.mxu0 0.0
      %583 = vmatprep.subr.mxu0 0.0
      %584 = vmatpush2.xpose.msra.mxu0 0.0
      %585 = vmatprep.subr.mxu0 0.0
      %586 = vmatpush2.xpose.msra.mxu0 0.0
      %587 = vmatprep.subr.mxu0 0.0
      %588 = vmatpush2.xpose.msra.mxu0 0.0
      %589 = vmatprep.subr.mxu0 0.0
      %590 = vmatpush2.xpose.msra.mxu0 0.0
      %591 = vmatprep.subr.mxu0 0.0
      %592 = vmatpush2.xpose.msra.mxu0 0.0
      %593 = vmatprep.subr.mxu0 0.0
      %594 = vmatpush2.xpose.msra.mxu0 0.0
      %595 = vmatprep.subr.mxu0 0.0
      %596 = vmatpush2.xpose.msra.mxu0 0.0
      %597 = vmatprep.subr.mxu0 0.0
      %598 = vmatpush2.xpose.msra.mxu0 0.0
      %599 = vmatprep.subr.mxu0 0.0
      %600 = vmatpush2.xpose.msra.mxu0 0.0
      %601 = vmatprep.mubr.f32.mxu0 0.0
      %602 = vmatmul.mubr.f32.gmra.mxu0 %v511
      %v603 = vpop.f32.mrf.mxu0
      %v604 = vadd.f32 0.0, %v603
      %v605 = vpop.f32.mrf.mxu0
      %606 = vdwg.mxu0
      %v607 = vld [vmem:[#allocation2] sm:$0xf]
      %v608 = vadd.f32 %v607, %v604
      %609 = vst.msk [vmem:[#allocation2] sm:$0xf] %vm276, %v608
      %s610 = scalar_lea.vmem %s164, 432
      %v611 = vld [vmem:[%s610] sm:$0xff]
      %v612 = vld [vmem:[%s610 + $0x10] sm:$0xff]
      %v613 = vld [vmem:[%s610 + $0x20] sm:$0xff]
      %v614 = vld [vmem:[%s610 + $0x30] sm:$0xff]
      %v615 = vld [vmem:[%s610 + $0x40] sm:$0xff]
      %v616 = vld [vmem:[%s610 + $0x50] sm:$0xff]
      %v617 = vld [vmem:[%s610 + $0x60] sm:$0xff]
      %v618 = vld [vmem:[%s610 + $0x70] sm:$0xff]
      %s619 = scalar_lea.vmem %s1, 16
      %v620 = vld [vmem:[%s619] sm:$0xf]
      %v622 = vsel %vm178, %v620, 0
      %v625 = vsel %vm178, %v611, 0
      %v628 = vsel %vm178, %v612, 0
      %v631 = vsel %vm178, %v613, 0
      %v634 = vsel %vm178, %v614, 0
      %v637 = vsel %vm178, %v615, 0
      %v640 = vsel %vm178, %v616, 0
      %v643 = vsel %vm178, %v617, 0
      %v646 = vsel %vm178, %v618, 0
      %648 = vmatprep.subr.mxu0 0.0
      %649 = vmatpush1.xpose.msra.mxu0 0.0
      %650 = vmatprep.subr.mxu0 0.0
      %651 = vmatpush1.xpose.msra.mxu0 0.0
      %652 = vmatprep.subr.mxu0 0.0
      %653 = vmatpush1.xpose.msra.mxu0 0.0
      %654 = vmatprep.subr.mxu0 0.0
      %655 = vmatpush1.xpose.msra.mxu0 0.0
      %656 = vmatprep.subr.mxu0 0.0
      %657 = vmatpush1.xpose.msra.mxu0 0.0
      %658 = vmatprep.subr.mxu0 0.0
      %659 = vmatpush1.xpose.msra.mxu0 0.0
      %660 = vmatprep.subr.mxu0 0.0
      %661 = vmatpush1.xpose.msra.mxu0 0.0
      %662 = vmatprep.subr.mxu0 0.0
      %663 = vmatpush1.xpose.msra.mxu0 0.0
      %664 = vmatprep.subr.mxu0 0.0
      %665 = vmatpush1.xpose.msra.mxu0 %v646
      %666 = vmatprep.subr.mxu0 0.0
      %667 = vmatpush1.xpose.msra.mxu0 %v643
      %668 = vmatprep.subr.mxu0 0.0
      %669 = vmatpush1.xpose.msra.mxu0 %v640
      %670 = vmatprep.subr.mxu0 0.0
      %671 = vmatpush1.xpose.msra.mxu0 %v637
      %672 = vmatprep.subr.mxu0 0.0
      %673 = vmatpush1.xpose.msra.mxu0 %v634
      %674 = vmatprep.subr.mxu0 0.0
      %675 = vmatpush1.xpose.msra.mxu0 %v631
      %676 = vmatprep.subr.mxu0 0.0
      %677 = vmatpush1.xpose.msra.mxu0 %v628
      %678 = vmatprep.subr.mxu0 0.0
      %679 = vmatpush1.xpose.msra.mxu0 %v625
      %680 = vmatprep.subr.mxu0 0.0
      %681 = vmatpush2.xpose.msra.mxu0 0.0
      %682 = vmatprep.subr.mxu0 0.0
      %683 = vmatpush2.xpose.msra.mxu0 0.0
      %684 = vmatprep.subr.mxu0 0.0
      %685 = vmatpush2.xpose.msra.mxu0 0.0
      %686 = vmatprep.subr.mxu0 0.0
      %687 = vmatpush2.xpose.msra.mxu0 0.0
      %688 = vmatprep.subr.mxu0 0.0
      %689 = vmatpush2.xpose.msra.mxu0 0.0
      %690 = vmatprep.subr.mxu0 0.0
      %691 = vmatpush2.xpose.msra.mxu0 0.0
      %692 = vmatprep.subr.mxu0 0.0
      %693 = vmatpush2.xpose.msra.mxu0 0.0
      %694 = vmatprep.subr.mxu0 0.0
      %695 = vmatpush2.xpose.msra.mxu0 0.0
      %696 = vmatprep.subr.mxu0 0.0
      %697 = vmatpush2.xpose.msra.mxu0 0.0
      %698 = vmatprep.subr.mxu0 0.0
      %699 = vmatpush2.xpose.msra.mxu0 0.0
      %700 = vmatprep.subr.mxu0 0.0
      %701 = vmatpush2.xpose.msra.mxu0 0.0
      %702 = vmatprep.subr.mxu0 0.0
      %703 = vmatpush2.xpose.msra.mxu0 0.0
      %704 = vmatprep.subr.mxu0 0.0
      %705 = vmatpush2.xpose.msra.mxu0 0.0
      %706 = vmatprep.subr.mxu0 0.0
      %707 = vmatpush2.xpose.msra.mxu0 0.0
      %708 = vmatprep.subr.mxu0 0.0
      %709 = vmatpush2.xpose.msra.mxu0 0.0
      %710 = vmatprep.subr.mxu0 0.0
      %711 = vmatpush2.xpose.msra.mxu0 0.0
      %712 = vmatprep.mubr.f32.mxu0 0.0
      %713 = vmatmul.mubr.f32.gmra.mxu0 %v622
      %v714 = vpop.f32.mrf.mxu0
      %v715 = vadd.f32 0.0, %v714
      %v716 = vpop.f32.mrf.mxu0
      %717 = vdwg.mxu0
      %v718 = vld [vmem:[#allocation2] sm:$0xf]
      %v719 = vadd.f32 %v718, %v715
      %720 = vst.msk [vmem:[#allocation2] sm:$0xf] %vm276, %v719
      %v721 = vld [vmem:[%s499 + $0x1] sm:$0xff]
      %v722 = vld [vmem:[%s499 + $0x11] sm:$0xff]
      %v723 = vld [vmem:[%s499 + $0x21] sm:$0xff]
      %v724 = vld [vmem:[%s499 + $0x31] sm:$0xff]
      %v725 = vld [vmem:[%s499 + $0x41] sm:$0xff]
      %v726 = vld [vmem:[%s499 + $0x51] sm:$0xff]
      %v727 = vld [vmem:[%s499 + $0x61] sm:$0xff]
      %v728 = vld [vmem:[%s499 + $0x71] sm:$0xff]
      %s729 = scalar_lea.vmem %s1, 20
      %v730 = vld [vmem:[%s729] sm:$0xf]
      %v732 = vsel %vm178, %v730, 0
      %v735 = vsel %vm178, %v721, 0
      %v738 = vsel %vm178, %v722, 0
      %v741 = vsel %vm178, %v723, 0
      %v744 = vsel %vm178, %v724, 0
      %v747 = vsel %vm178, %v725, 0
      %v750 = vsel %vm178, %v726, 0
      %v753 = vsel %vm178, %v727, 0
      %v756 = vsel %vm178, %v728, 0
      %758 = vmatprep.subr.mxu0 0.0
      %759 = vmatpush1.xpose.msra.mxu0 0.0
      %760 = vmatprep.subr.mxu0 0.0
      %761 = vmatpush1.xpose.msra.mxu0 0.0
      %762 = vmatprep.subr.mxu0 0.0
      %763 = vmatpush1.xpose.msra.mxu0 0.0
      %764 = vmatprep.subr.mxu0 0.0
      %765 = vmatpush1.xpose.msra.mxu0 0.0
      %766 = vmatprep.subr.mxu0 0.0
      %767 = vmatpush1.xpose.msra.mxu0 0.0
      %768 = vmatprep.subr.mxu0 0.0
      %769 = vmatpush1.xpose.msra.mxu0 0.0
      %770 = vmatprep.subr.mxu0 0.0
      %771 = vmatpush1.xpose.msra.mxu0 0.0
      %772 = vmatprep.subr.mxu0 0.0
      %773 = vmatpush1.xpose.msra.mxu0 0.0
      %774 = vmatprep.subr.mxu0 0.0
      %775 = vmatpush1.xpose.msra.mxu0 %v756
      %776 = vmatprep.subr.mxu0 0.0
      %777 = vmatpush1.xpose.msra.mxu0 %v753
      %778 = vmatprep.subr.mxu0 0.0
      %779 = vmatpush1.xpose.msra.mxu0 %v750
      %780 = vmatprep.subr.mxu0 0.0
      %781 = vmatpush1.xpose.msra.mxu0 %v747
      %782 = vmatprep.subr.mxu0 0.0
      %783 = vmatpush1.xpose.msra.mxu0 %v744
      %784 = vmatprep.subr.mxu0 0.0
      %785 = vmatpush1.xpose.msra.mxu0 %v741
      %786 = vmatprep.subr.mxu0 0.0
      %787 = vmatpush1.xpose.msra.mxu0 %v738
      %788 = vmatprep.subr.mxu0 0.0
      %789 = vmatpush1.xpose.msra.mxu0 %v735
      %790 = vmatprep.subr.mxu0 0.0
      %791 = vmatpush2.xpose.msra.mxu0 0.0
      %792 = vmatprep.subr.mxu0 0.0
      %793 = vmatpush2.xpose.msra.mxu0 0.0
      %794 = vmatprep.subr.mxu0 0.0
      %795 = vmatpush2.xpose.msra.mxu0 0.0
      %796 = vmatprep.subr.mxu0 0.0
      %797 = vmatpush2.xpose.msra.mxu0 0.0
      %798 = vmatprep.subr.mxu0 0.0
      %799 = vmatpush2.xpose.msra.mxu0 0.0
      %800 = vmatprep.subr.mxu0 0.0
      %801 = vmatpush2.xpose.msra.mxu0 0.0
      %802 = vmatprep.subr.mxu0 0.0
      %803 = vmatpush2.xpose.msra.mxu0 0.0
      %804 = vmatprep.subr.mxu0 0.0
      %805 = vmatpush2.xpose.msra.mxu0 0.0
      %806 = vmatprep.subr.mxu0 0.0
      %807 = vmatpush2.xpose.msra.mxu0 0.0
      %808 = vmatprep.subr.mxu0 0.0
      %809 = vmatpush2.xpose.msra.mxu0 0.0
      %810 = vmatprep.subr.mxu0 0.0
      %811 = vmatpush2.xpose.msra.mxu0 0.0
      %812 = vmatprep.subr.mxu0 0.0
      %813 = vmatpush2.xpose.msra.mxu0 0.0
      %814 = vmatprep.subr.mxu0 0.0
      %815 = vmatpush2.xpose.msra.mxu0 0.0
      %816 = vmatprep.subr.mxu0 0.0
      %817 = vmatpush2.xpose.msra.mxu0 0.0
      %818 = vmatprep.subr.mxu0 0.0
      %819 = vmatpush2.xpose.msra.mxu0 0.0
      %820 = vmatprep.subr.mxu0 0.0
      %821 = vmatpush2.xpose.msra.mxu0 0.0
      %822 = vmatprep.mubr.f32.mxu0 0.0
      %823 = vmatmul.mubr.f32.gmra.mxu0 %v732
      %v824 = vpop.f32.mrf.mxu0
      %v825 = vadd.f32 0.0, %v824
      %v826 = vpop.f32.mrf.mxu0
      %827 = vdwg.mxu0
      %v828 = vld [vmem:[#allocation2] sm:$0xf]
      %v829 = vadd.f32 %v828, %v825
      %830 = vst.msk [vmem:[#allocation2] sm:$0xf] %vm276, %v829
      %s831 = scalar_lea.vmem %s164, 16
      %v832 = vld [vmem:[%s831] sm:$0xff]
      %v833 = vld [vmem:[%s831 + $0x10] sm:$0xff]
      %v834 = vld [vmem:[%s831 + $0x20] sm:$0xff]
      %v835 = vld [vmem:[%s831 + $0x30] sm:$0xff]
      %v836 = vld [vmem:[%s831 + $0x40] sm:$0xff]
      %v837 = vld [vmem:[%s831 + $0x50] sm:$0xff]
      %v838 = vld [vmem:[%s831 + $0x60] sm:$0xff]
      %v839 = vld [vmem:[%s831 + $0x70] sm:$0xff]
      %s840 = scalar_lea.vmem %s1, 24
      %v841 = vld [vmem:[%s840] sm:$0xf]
      %v843 = vsel %vm178, %v841, 0
      %v846 = vsel %vm178, %v832, 0
      %v849 = vsel %vm178, %v833, 0
      %v852 = vsel %vm178, %v834, 0
      %v855 = vsel %vm178, %v835, 0
      %v858 = vsel %vm178, %v836, 0
      %v861 = vsel %vm178, %v837, 0
      %v864 = vsel %vm178, %v838, 0
      %v867 = vsel %vm178, %v839, 0
      %869 = vmatprep.subr.mxu0 0.0
      %870 = vmatpush1.xpose.msra.mxu0 0.0
      %871 = vmatprep.subr.mxu0 0.0
      %872 = vmatpush1.xpose.msra.mxu0 0.0
      %873 = vmatprep.subr.mxu0 0.0
      %874 = vmatpush1.xpose.msra.mxu0 0.0
      %875 = vmatprep.subr.mxu0 0.0
      %876 = vmatpush1.xpose.msra.mxu0 0.0
      %877 = vmatprep.subr.mxu0 0.0
      %878 = vmatpush1.xpose.msra.mxu0 0.0
      %879 = vmatprep.subr.mxu0 0.0
      %880 = vmatpush1.xpose.msra.mxu0 0.0
      %881 = vmatprep.subr.mxu0 0.0
      %882 = vmatpush1.xpose.msra.mxu0 0.0
      %883 = vmatprep.subr.mxu0 0.0
      %884 = vmatpush1.xpose.msra.mxu0 0.0
      %885 = vmatprep.subr.mxu0 0.0
      %886 = vmatpush1.xpose.msra.mxu0 %v867
      %887 = vmatprep.subr.mxu0 0.0
      %888 = vmatpush1.xpose.msra.mxu0 %v864
      %889 = vmatprep.subr.mxu0 0.0
      %890 = vmatpush1.xpose.msra.mxu0 %v861
      %891 = vmatprep.subr.mxu0 0.0
      %892 = vmatpush1.xpose.msra.mxu0 %v858
      %893 = vmatprep.subr.mxu0 0.0
      %894 = vmatpush1.xpose.msra.mxu0 %v855
      %895 = vmatprep.subr.mxu0 0.0
      %896 = vmatpush1.xpose.msra.mxu0 %v852
      %897 = vmatprep.subr.mxu0 0.0
      %898 = vmatpush1.xpose.msra.mxu0 %v849
      %899 = vmatprep.subr.mxu0 0.0
      %900 = vmatpush1.xpose.msra.mxu0 %v846
      %901 = vmatprep.subr.mxu0 0.0
      %902 = vmatpush2.xpose.msra.mxu0 0.0
      %903 = vmatprep.subr.mxu0 0.0
      %904 = vmatpush2.xpose.msra.mxu0 0.0
      %905 = vmatprep.subr.mxu0 0.0
      %906 = vmatpush2.xpose.msra.mxu0 0.0
      %907 = vmatprep.subr.mxu0 0.0
      %908 = vmatpush2.xpose.msra.mxu0 0.0
      %909 = vmatprep.subr.mxu0 0.0
      %910 = vmatpush2.xpose.msra.mxu0 0.0
      %911 = vmatprep.subr.mxu0 0.0
      %912 = vmatpush2.xpose.msra.mxu0 0.0
      %913 = vmatprep.subr.mxu0 0.0
      %914 = vmatpush2.xpose.msra.mxu0 0.0
      %915 = vmatprep.subr.mxu0 0.0
      %916 = vmatpush2.xpose.msra.mxu0 0.0
      %917 = vmatprep.subr.mxu0 0.0
      %918 = vmatpush2.xpose.msra.mxu0 0.0
      %919 = vmatprep.subr.mxu0 0.0
      %920 = vmatpush2.xpose.msra.mxu0 0.0
      %921 = vmatprep.subr.mxu0 0.0
      %922 = vmatpush2.xpose.msra.mxu0 0.0
      %923 = vmatprep.subr.mxu0 0.0
      %924 = vmatpush2.xpose.msra.mxu0 0.0
      %925 = vmatprep.subr.mxu0 0.0
      %926 = vmatpush2.xpose.msra.mxu0 0.0
      %927 = vmatprep.subr.mxu0 0.0
      %928 = vmatpush2.xpose.msra.mxu0 0.0
      %929 = vmatprep.subr.mxu0 0.0
      %930 = vmatpush2.xpose.msra.mxu0 0.0
      %931 = vmatprep.subr.mxu0 0.0
      %932 = vmatpush2.xpose.msra.mxu0 0.0
      %933 = vmatprep.mubr.f32.mxu0 0.0
      %934 = vmatmul.mubr.f32.gmra.mxu0 %v843
      %v935 = vpop.f32.mrf.mxu0
      %v936 = vadd.f32 0.0, %v935
      %v937 = vpop.f32.mrf.mxu0
      %938 = vdwg.mxu0
      %v939 = vld [vmem:[#allocation2] sm:$0xf]
      %v940 = vadd.f32 %v939, %v936
      %941 = vst.msk [vmem:[#allocation2] sm:$0xf] %vm276, %v940
      %s942 = scalar_lea.vmem %s164, 160
      %v943 = vld [vmem:[%s942] sm:$0xff]
      %v944 = vld [vmem:[%s942 + $0x10] sm:$0xff]
      %v945 = vld [vmem:[%s942 + $0x20] sm:$0xff]
      %v946 = vld [vmem:[%s942 + $0x30] sm:$0xff]
      %v947 = vld [vmem:[%s942 + $0x40] sm:$0xff]
      %v948 = vld [vmem:[%s942 + $0x50] sm:$0xff]
      %v949 = vld [vmem:[%s942 + $0x60] sm:$0xff]
      %v950 = vld [vmem:[%s942 + $0x70] sm:$0xff]
      %s951 = scalar_lea.vmem %s1, 28
      %v952 = vld [vmem:[%s951] sm:$0xf]
      %v954 = vsel %vm178, %v952, 0
      %v957 = vsel %vm178, %v943, 0
      %v960 = vsel %vm178, %v944, 0
      %v963 = vsel %vm178, %v945, 0
      %v966 = vsel %vm178, %v946, 0
      %v969 = vsel %vm178, %v947, 0
      %v972 = vsel %vm178, %v948, 0
      %v975 = vsel %vm178, %v949, 0
      %v978 = vsel %vm178, %v950, 0
      %980 = vmatprep.subr.mxu0 0.0
      %981 = vmatpush1.xpose.msra.mxu0 0.0
      %982 = vmatprep.subr.mxu0 0.0
      %983 = vmatpush1.xpose.msra.mxu0 0.0
      %984 = vmatprep.subr.mxu0 0.0
      %985 = vmatpush1.xpose.msra.mxu0 0.0
      %986 = vmatprep.subr.mxu0 0.0
      %987 = vmatpush1.xpose.msra.mxu0 0.0
      %988 = vmatprep.subr.mxu0 0.0
      %989 = vmatpush1.xpose.msra.mxu0 0.0
      %990 = vmatprep.subr.mxu0 0.0
      %991 = vmatpush1.xpose.msra.mxu0 0.0
      %992 = vmatprep.subr.mxu0 0.0
      %993 = vmatpush1.xpose.msra.mxu0 0.0
      %994 = vmatprep.subr.mxu0 0.0
      %995 = vmatpush1.xpose.msra.mxu0 0.0
      %996 = vmatprep.subr.mxu0 0.0
      %997 = vmatpush1.xpose.msra.mxu0 %v978
      %998 = vmatprep.subr.mxu0 0.0
      %999 = vmatpush1.xpose.msra.mxu0 %v975
      %1000 = vmatprep.subr.mxu0 0.0
      %1001 = vmatpush1.xpose.msra.mxu0 %v972
      %1002 = vmatprep.subr.mxu0 0.0
      %1003 = vmatpush1.xpose.msra.mxu0 %v969
      %1004 = vmatprep.subr.mxu0 0.0
      %1005 = vmatpush1.xpose.msra.mxu0 %v966
      %1006 = vmatprep.subr.mxu0 0.0
      %1007 = vmatpush1.xpose.msra.mxu0 %v963
      %1008 = vmatprep.subr.mxu0 0.0
      %1009 = vmatpush1.xpose.msra.mxu0 %v960
      %1010 = vmatprep.subr.mxu0 0.0
      %1011 = vmatpush1.xpose.msra.mxu0 %v957
      %1012 = vmatprep.subr.mxu0 0.0
      %1013 = vmatpush2.xpose.msra.mxu0 0.0
      %1014 = vmatprep.subr.mxu0 0.0
      %1015 = vmatpush2.xpose.msra.mxu0 0.0
      %1016 = vmatprep.subr.mxu0 0.0
      %1017 = vmatpush2.xpose.msra.mxu0 0.0
      %1018 = vmatprep.subr.mxu0 0.0
      %1019 = vmatpush2.xpose.msra.mxu0 0.0
      %1020 = vmatprep.subr.mxu0 0.0
      %1021 = vmatpush2.xpose.msra.mxu0 0.0
      %1022 = vmatprep.subr.mxu0 0.0
      %1023 = vmatpush2.xpose.msra.mxu0 0.0
      %1024 = vmatprep.subr.mxu0 0.0
      %1025 = vmatpush2.xpose.msra.mxu0 0.0
      %1026 = vmatprep.subr.mxu0 0.0
      %1027 = vmatpush2.xpose.msra.mxu0 0.0
      %1028 = vmatprep.subr.mxu0 0.0
      %1029 = vmatpush2.xpose.msra.mxu0 0.0
      %1030 = vmatprep.subr.mxu0 0.0
      %1031 = vmatpush2.xpose.msra.mxu0 0.0
      %1032 = vmatprep.subr.mxu0 0.0
      %1033 = vmatpush2.xpose.msra.mxu0 0.0
      %1034 = vmatprep.subr.mxu0 0.0
      %1035 = vmatpush2.xpose.msra.mxu0 0.0
      %1036 = vmatprep.subr.mxu0 0.0
      %1037 = vmatpush2.xpose.msra.mxu0 0.0
      %1038 = vmatprep.subr.mxu0 0.0
      %1039 = vmatpush2.xpose.msra.mxu0 0.0
      %1040 = vmatprep.subr.mxu0 0.0
      %1041 = vmatpush2.xpose.msra.mxu0 0.0
      %1042 = vmatprep.subr.mxu0 0.0
      %1043 = vmatpush2.xpose.msra.mxu0 0.0
      %1044 = vmatprep.mubr.f32.mxu0 0.0
      %1045 = vmatmul.mubr.f32.gmra.mxu0 %v954
      %v1046 = vpop.f32.mrf.mxu0
      %v1047 = vadd.f32 0.0, %v1046
      %v1048 = vpop.f32.mrf.mxu0
      %1049 = vdwg.mxu0
      %v1050 = vld [vmem:[#allocation2] sm:$0xf]
      %v1051 = vadd.f32 %v1050, %v1047
      %1052 = vst.msk [vmem:[#allocation2] sm:$0xf] %vm276, %v1051
      %v1053 = vld [vmem:[%s831 + $0x1] sm:$0xff]
      %v1054 = vld [vmem:[%s831 + $0x11] sm:$0xff]
      %v1055 = vld [vmem:[%s831 + $0x21] sm:$0xff]
      %v1056 = vld [vmem:[%s831 + $0x31] sm:$0xff]
      %v1057 = vld [vmem:[%s831 + $0x41] sm:$0xff]
      %v1058 = vld [vmem:[%s831 + $0x51] sm:$0xff]
      %v1059 = vld [vmem:[%s831 + $0x61] sm:$0xff]
      %v1060 = vld [vmem:[%s831 + $0x71] sm:$0xff]
      %s1061 = scalar_lea.vmem %s1, 32
      %v1062 = vld [vmem:[%s1061] sm:$0xf]
      %v1064 = vsel %vm178, %v1062, 0
      %v1067 = vsel %vm178, %v1053, 0
      %v1070 = vsel %vm178, %v1054, 0
      %v1073 = vsel %vm178, %v1055, 0
      %v1076 = vsel %vm178, %v1056, 0
      %v1079 = vsel %vm178, %v1057, 0
      %v1082 = vsel %vm178, %v1058, 0
      %v1085 = vsel %vm178, %v1059, 0
      %v1088 = vsel %vm178, %v1060, 0
      %1090 = vmatprep.subr.mxu0 0.0
      %1091 = vmatpush1.xpose.msra.mxu0 0.0
      %1092 = vmatprep.subr.mxu0 0.0
      %1093 = vmatpush1.xpose.msra.mxu0 0.0
      %1094 = vmatprep.subr.mxu0 0.0
      %1095 = vmatpush1.xpose.msra.mxu0 0.0
      %1096 = vmatprep.subr.mxu0 0.0
      %1097 = vmatpush1.xpose.msra.mxu0 0.0
      %1098 = vmatprep.subr.mxu0 0.0
      %1099 = vmatpush1.xpose.msra.mxu0 0.0
      %1100 = vmatprep.subr.mxu0 0.0
      %1101 = vmatpush1.xpose.msra.mxu0 0.0
      %1102 = vmatprep.subr.mxu0 0.0
      %1103 = vmatpush1.xpose.msra.mxu0 0.0
      %1104 = vmatprep.subr.mxu0 0.0
      %1105 = vmatpush1.xpose.msra.mxu0 0.0
      %1106 = vmatprep.subr.mxu0 0.0
      %1107 = vmatpush1.xpose.msra.mxu0 %v1088
      %1108 = vmatprep.subr.mxu0 0.0
      %1109 = vmatpush1.xpose.msra.mxu0 %v1085
      %1110 = vmatprep.subr.mxu0 0.0
      %1111 = vmatpush1.xpose.msra.mxu0 %v1082
      %1112 = vmatprep.subr.mxu0 0.0
      %1113 = vmatpush1.xpose.msra.mxu0 %v1079
      %1114 = vmatprep.subr.mxu0 0.0
      %1115 = vmatpush1.xpose.msra.mxu0 %v1076
      %1116 = vmatprep.subr.mxu0 0.0
      %1117 = vmatpush1.xpose.msra.mxu0 %v1073
      %1118 = vmatprep.subr.mxu0 0.0
      %1119 = vmatpush1.xpose.msra.mxu0 %v1070
      %1120 = vmatprep.subr.mxu0 0.0
      %1121 = vmatpush1.xpose.msra.mxu0 %v1067
      %1122 = vmatprep.subr.mxu0 0.0
      %1123 = vmatpush2.xpose.msra.mxu0 0.0
      %1124 = vmatprep.subr.mxu0 0.0
      %1125 = vmatpush2.xpose.msra.mxu0 0.0
      %1126 = vmatprep.subr.mxu0 0.0
      %1127 = vmatpush2.xpose.msra.mxu0 0.0
      %1128 = vmatprep.subr.mxu0 0.0
      %1129 = vmatpush2.xpose.msra.mxu0 0.0
      %1130 = vmatprep.subr.mxu0 0.0
      %1131 = vmatpush2.xpose.msra.mxu0 0.0
      %1132 = vmatprep.subr.mxu0 0.0
      %1133 = vmatpush2.xpose.msra.mxu0 0.0
      %1134 = vmatprep.subr.mxu0 0.0
      %1135 = vmatpush2.xpose.msra.mxu0 0.0
      %1136 = vmatprep.subr.mxu0 0.0
      %1137 = vmatpush2.xpose.msra.mxu0 0.0
      %1138 = vmatprep.subr.mxu0 0.0
      %1139 = vmatpush2.xpose.msra.mxu0 0.0
      %1140 = vmatprep.subr.mxu0 0.0
      %1141 = vmatpush2.xpose.msra.mxu0 0.0
      %1142 = vmatprep.subr.mxu0 0.0
      %1143 = vmatpush2.xpose.msra.mxu0 0.0
      %1144 = vmatprep.subr.mxu0 0.0
      %1145 = vmatpush2.xpose.msra.mxu0 0.0
      %1146 = vmatprep.subr.mxu0 0.0
      %1147 = vmatpush2.xpose.msra.mxu0 0.0
      %1148 = vmatprep.subr.mxu0 0.0
      %1149 = vmatpush2.xpose.msra.mxu0 0.0
      %1150 = vmatprep.subr.mxu0 0.0
      %1151 = vmatpush2.xpose.msra.mxu0 0.0
      %1152 = vmatprep.subr.mxu0 0.0
      %1153 = vmatpush2.xpose.msra.mxu0 0.0
      %1154 = vmatprep.mubr.f32.mxu0 0.0
      %1155 = vmatmul.mubr.f32.gmra.mxu0 %v1064
      %v1156 = vpop.f32.mrf.mxu0
      %v1157 = vadd.f32 0.0, %v1156
      %v1158 = vpop.f32.mrf.mxu0
      %1159 = vdwg.mxu0
      %v1160 = vld [vmem:[#allocation2] sm:$0xf]
      %v1161 = vadd.f32 %v1160, %v1157
      %1162 = vst.msk [vmem:[#allocation2] sm:$0xf] %vm276, %v1161
      %v1163 = vld [vmem:[#allocation2] sm:$0xf]
      %v1164 = vld [vmem:[%s2] sm:$0xf]
      %1166 = vset.pattern.permute.xlu0 0
      %1167 = vperm.xlu0 %1166, %v1164
      %v1168 = vpop.permute.xlu0 %1167
      %v1170 = vadd.f32 %v1163, %v1168
      %1171 = vst.msk [vmem:[%s168] sm:$0xf] %vm276, %v1170
      %p1172 = scmp.lt.s32.totalorder %s14, 1
      %s1173 = scalar_select %p1172, %s14, 1
      %s1174 = smul.addr %s1173, 4
      %s1175 = scalar_lea.vmem %s3, %s1174
      // Predicated region
      $region33: #{downsample.1} parent=31 // pred_check
        %p1176 = pneg %p100
      $region34: #{downsample.1} parent=31 // pred_check_branch
        %1178 = sbr.rel (%p1176) target = $region36
      $region35: #{downsample.1} parent=31 // pred_region
        _
      $region36: #{downsample.1} parent=31 // pred_fallthru
        _
    $region32: #{downsample.1} parent=5 // pred_fallthru
      _
    %p1179 = scmp.le.s32.totalorder 2, %s9
    // Predicated region
    $region37: #{downsample.1} parent=5 // pred_check
      %p1180 = pneg %p1179
    $region38: #{downsample.1} parent=5 // pred_check_branch
      %1182 = sbr.rel (%p1180) target = $region40
    $region39: #{downsample.1} parent=5 // pred_region
      %s1183 = ssub.s32 %s9, 2
      // Predicated region
      $region41: #{downsample.1} parent=39 // pred_check
        %p1184 = pneg %p106
      $region42: #{downsample.1} parent=39 // pred_check_branch
        %1186 = sbr.rel (%p1184) target = $region44
      $region43: #{downsample.1} parent=39 // pred_region
        %p1187 = scmp.lt.s32.totalorder %s15, 1
        %s1188 = scalar_select %p1187, %s15, 1
        %s1189 = smul.addr %s1188, 4
        %s1190 = scalar_lea.vmem %s3, %s1189
      $region44: #{downsample.1} parent=39 // pred_fallthru
        _
    $region40: #{downsample.1} parent=5 // pred_fallthru
      _
  $region6: #{downsample.1} parent=0 // loop_footer
    %s13 = sadd.s32 1, %s9
  $region7: #{downsample.1} parent=0 // loop_footer_branch
    %8 = sbr.rel target = $region3
  $region8: #{downsample.1} parent=0 // loop_exit
    _

</llo_original>
